<compile_context>
chip_gen: v7x
topology: tpu7x:2x2x1
jax: 0.10.0
libtpu: 0.0.40
codegen_flags: <defaults>
</compile_context>

<pallas_src>
import jax
import jax.numpy as jnp
from jax import lax
from jax.experimental import pallas as pl
from jax.experimental.pallas import tpu as pltpu


def _round_up(x: int, m: int) -> int:
    return ((x + m - 1) // m) * m


def _sublane_multiple(dtype) -> int:
    # Packing tile along the sublane axis: 8 for 32-bit, 16 for bf16, 32 for
    # int8 / fp8.
    itemsize = jnp.dtype(dtype).itemsize
    return max(8, 8 * (4 // max(1, itemsize)))


def _vmem_capacity_bytes() -> int:
    # Per-TensorCore VMEM capacity; conservative fallback (v7x: 64 MiB/TC).
    try:
        return int(pltpu.get_tpu_info().vmem_capacity_bytes)
    except Exception:
        return 64 << 20


def _select_tiles(M, V, D, in_dtype, w_dtype, out_dtype, vmem_cap,
                  tm_target=None, tv_target=None):
    """Pick (tm, tv, vmem_estimate) so double-buffered tiles fit in VMEM."""
    in_b = jnp.dtype(in_dtype).itemsize
    w_b = jnp.dtype(w_dtype).itemsize
    o_b = jnp.dtype(out_dtype).itemsize
    sub = _sublane_multiple(in_dtype)

    decode = M <= 64
    if tv_target is None:
        # Decode is weight-DMA bound: fewer, larger grid steps; prefill keeps
        # tv at 512 for lane-dense output stores and full MXU N-fill.
        tv_target = 2048 if decode else 512
    tv = min(_round_up(tv_target, 128), _round_up(V, 128))

    if tm_target is None:
        tm_target = 4096  # let the VMEM budget shrink it per generation
    tm = min(_round_up(M, sub), _round_up(tm_target, sub))

    # Double-buffered x / weight / out tiles + f32 matmul temporary.
    def est(tm_, tv_):
        return (2 * (tm_ * D * in_b + tv_ * D * w_b + tm_ * tv_ * o_b)
                + tm_ * tv_ * 4)

    budget = int(0.60 * vmem_cap)  # headroom for compiler scratch
    while tm > sub and est(tm, tv) > budget:
        tm = max(sub, _round_up(tm // 2, sub))
    while tv > 128 and est(tm, tv) > budget:
        tv = max(128, tv // 2)
    return tm, tv, est(tm, tv)


def _lm_head_kernel(x_ref, w_ref, o_ref):
    # x_ref: (tm, D) activation tile (reused across the inner vocab axis)
    # w_ref: (tv, D) weight tile in its NATIVE PyTorch layout (no transpose)
    # o_ref: (tm, tv) logits tile
    o_ref[...] = lax.dot_general(
        x_ref[...], w_ref[...],
        dimension_numbers=(((1,), (1,)), ((), ())),   # contract both on D
        preferred_element_type=jnp.float32,
    ).astype(o_ref.dtype)


def gpt2_lm_head(hidden_state: jax.Array, weight: jax.Array, *,
                 tm: int | None = None, tv: int | None = None):
    """GPT-2 LM head: logits = hidden_state @ weight.T

    hidden_state: (B, S, D); weight: (V, D) tied embedding (PyTorch layout).
    Returns logits of shape (B, S, V) in hidden_state.dtype (f32 accumulation
    on the MXU).  Pass bf16 inputs for halved HBM traffic; keep f32 inputs if
    the consumer needs f32-precision logits.
    """
    B, S, D = hidden_state.shape
    V, D_w = weight.shape
    assert D == D_w, "embedding dim mismatch"

    M = B * S
    out_dtype = hidden_state.dtype
    x2d = hidden_state.reshape(M, D)

    vmem_cap = _vmem_capacity_bytes()
    tm_eff, tv_eff, est = _select_tiles(
        M, V, D, hidden_state.dtype, weight.dtype, out_dtype, vmem_cap,
        tm_target=tm, tv_target=tv)

    # VMEM limit: never below the estimate, capped at a safe fraction of the
    # per-TC physical capacity (v5e/v6e 128 MiB, v7x 64 MiB).
    vmem_limit = int(min(max(int(est * 1.25), 16 << 20), int(0.85 * vmem_cap)))
    assert est <= vmem_limit, (est, vmem_limit)

    n_m_tiles = pl.cdiv(M, tm_eff)
    n_v_tiles = pl.cdiv(V, tv_eff)
    grid = (n_m_tiles, n_v_tiles)  # vocab axis innermost: x tile DMA'd once

    # Weight tile in native (V, D) layout, streamed along the vocab axis.
    w_spec = pl.BlockSpec((tv_eff, D), lambda i, j: (j, 0))
    if M <= 64 and n_v_tiles > 2:
        # Decode: deeper buffering keeps the (dominant) weight stream
        # back-to-back; VMEM is essentially free since tm_eff is tiny.
        try:
            w_spec = pl.BlockSpec((tv_eff, D), lambda i, j: (j, 0),
                                  pipeline_mode=pl.Buffered(3))
        except TypeError:
            pass  # older jax: fall back to default double-buffering

    logits2d = pl.pallas_call(
        _lm_head_kernel,
        out_shape=jax.ShapeDtypeStruct((M, V), out_dtype),
        grid_spec=pltpu.PrefetchScalarGridSpec(
            num_scalar_prefetch=0,
            grid=grid,
            in_specs=[
                # Activation tile: constant along the inner (vocab) axis, so it
                # is DMA'd once per M tile and reused for every vocab tile.
                pl.BlockSpec((tm_eff, D), lambda i, j: (i, 0)),
                w_spec,
            ],
            out_specs=pl.BlockSpec((tm_eff, tv_eff), lambda i, j: (i, j)),
        ),
        compiler_params=pltpu.CompilerParams(
            # No cross-step accumulation -> both axes parallel (megacore
            # shards across the 2 TCs on v7x; budget above is per-TC).
            dimension_semantics=("parallel", "parallel"),
            vmem_limit_bytes=vmem_limit,
        ),
    )(x2d, weight)

    return logits2d.reshape(B, S, V)


if __name__ == "__main__":
    # Small, deterministic shapes consistent with the module's forward:
    # batch=2, seq=8, n_embd=32, vocab=256.
    B, S, D, V = 2, 8, 32, 256

    key = jax.random.PRNGKey(0)
    k_h, k_w = jax.random.split(key)

    hidden_state = jax.random.normal(k_h, (B, S, D), dtype=jnp.float32)
    # Tied embedding weight (vocab_size, n_embd), ~N(0, 0.02) like GPT-2 init.
    embed_weight = 0.02 * jax.random.normal(k_w, (V, D), dtype=jnp.float32)

    logits = gpt2_lm_head(hidden_state, embed_weight)
    logits = jax.block_until_ready(logits)

    # Reference check against plain JAX (same math as PyTorch nn.Linear, no bias).
    ref = jnp.einsum("bsd,vd->bsv", hidden_state, embed_weight)
    assert logits.shape == (B, S, V)
    assert jnp.allclose(logits, ref, atol=1e-4, rtol=1e-4)

    print("KERNEL_OK")
</pallas_src>

<mosaic_0001>
module attributes {stable_mosaic.version = 11 : i64} {
  func.func @_lm_head_kernel(%arg0: i32, %arg1: i32, %arg2: memref<16x32xf32, #tpu.memory_space<vmem>>, %arg3: memref<256x32xf32, #tpu.memory_space<vmem>>, %arg4: memref<16x256xf32, #tpu.memory_space<vmem>>) attributes {dimension_semantics = [#tpu.dimension_semantics<parallel>, #tpu.dimension_semantics<parallel>], iteration_bounds = array<i64: 1, 1>, scalar_prefetch = 0 : i64, scratch_operands = 0 : i64, tpu.core_type = #tpu.core_type<tc>, window_params = [{transform_indices = @transform_0, window_bounds = array<i64: 16, 32>}, {transform_indices = @transform_1, window_bounds = array<i64: 256, 32>}, {transform_indices = @transform_2, window_bounds = array<i64: 16, 256>}]} {
    %c0 = arith.constant 0 : index
    %c0_0 = arith.constant 0 : index
    %0 = vector.load %arg2[%c0, %c0_0] : memref<16x32xf32, #tpu.memory_space<vmem>>, vector<16x32xf32>
    %c0_1 = arith.constant 0 : index
    %c0_2 = arith.constant 0 : index
    %1 = vector.load %arg3[%c0_1, %c0_2] : memref<256x32xf32, #tpu.memory_space<vmem>>, vector<256x32xf32>
    %cst = arith.constant dense<0.000000e+00> : vector<16x256xf32>
    %2 = tpu.matmul %0, %1, %cst {dimension_numbers = #tpu.dot_dimension_numbers<[1], [1], [0], [0], [0, 0, 1, 0], [], []>} : vector<16x32xf32>, vector<256x32xf32>, vector<16x256xf32> -> vector<16x256xf32>
    %c0_3 = arith.constant 0 : index
    %c0_4 = arith.constant 0 : index
    %3 = vector.load %arg4[%c0_3, %c0_4] : memref<16x256xf32, #tpu.memory_space<vmem>>, vector<16x256xf32>
    tpu.vector_store %arg4[%c0_3, %c0_4], %2 {strides = array<i32>} : memref<16x256xf32, #tpu.memory_space<vmem>>, vector<16x256xf32>,
    return
  }
  func.func @transform_0(%arg0: i32, %arg1: i32) -> (i32, i32) {
    %c0_i32 = arith.constant 0 : i32
    %c0_i32_0 = arith.constant 0 : i32
    return %arg0, %c0_i32 : i32, i32
  }
  func.func @transform_1(%arg0: i32, %arg1: i32) -> (i32, i32) {
    %c0_i32 = arith.constant 0 : i32
    %c0_i32_0 = arith.constant 0 : i32
    return %arg1, %c0_i32 : i32, i32
  }
  func.func @transform_2(%arg0: i32, %arg1: i32) -> (i32, i32) {
    %c0_i32 = arith.constant 0 : i32
    return %arg0, %arg1 : i32, i32
  }
}

</mosaic_0001>

<llo_original>
// kernel: tpu_custom_call.1
$region0: #{tpu_custom_call.1}
  #allocation0 [shape = 'u32[]', space=smem, size = 0x4, offset = 0x4, fixed_abs, tag = 'smem constant byte address 0x4 - core index']
  #allocation1 [shape = 'u32[144,128]{1,0:T(1,128)}', space=vmem, size = 0x12000, scoped, tag = 'internal scratch']
  %s0 = inlined_call_operand.vmem [shape: f32[16,32], index: 0, kind: input, shape index: {}]
  %s1 = inlined_call_operand.vmem [shape: f32[256,32], index: 1, kind: input, shape index: {}]
  %s2 = inlined_call_operand.hbm [shape: f32[16,256], index: 2, kind: output, shape index: {}]
  %s3 = sld [smem:[#allocation0]]
  $region18: #{tpu_custom_call.1} parent=0
    _
  %s5 = ssub.s32 1, %s3
  %s6 = scalar_select 0, %s5, %s3
  $region1: #{tpu_custom_call.1} parent=0
    #allocation2 [shape = 'u8[16384]{0}', space=vmem, size = 0x4000, scoped, tag = 'output window, operand 0, single buffered']
    #allocation3 [shape = 's32[1]{0}', space=sflag, size = 0x4, scoped, tag = 'scoped memory for tpu_custom_call.1']
    %7 = vsyncpa [#allocation3], 0
    // Predicated region
    $region2: #{tpu_custom_call.1} parent=1 // pred_check
      _
    $region3: #{tpu_custom_call.1} parent=1 // pred_check_branch
      %9 = sbr.rel (0) target = $region5
    $region4: #{tpu_custom_call.1} parent=1 // pred_region
      _
    $region5: #{tpu_custom_call.1} parent=1 // pred_fallthru
      _
    // Predicated region
    $region6: #{tpu_custom_call.1} parent=1 // pred_check
      _
    $region7: #{tpu_custom_call.1} parent=1 // pred_check_branch
      %11 = sbr.rel (0) target = $region9
    $region8: #{tpu_custom_call.1} parent=1 // pred_region
      _
    $region9: #{tpu_custom_call.1} parent=1 // pred_fallthru
      _
    %v12 = vld [vmem:[%s0] sm:$0xff]
    %v13 = vld [vmem:[%s0 + $0x8] sm:$0xff]
    %v14 = vld [vmem:[%s1] sm:$0xff]
    %v15 = vld [vmem:[%s1 + $0x8] sm:$0xff]
    %v16 = vld [vmem:[%s1 + $0x10] sm:$0xff]
    %v17 = vld [vmem:[%s1 + $0x18] sm:$0xff]
    %v18 = vld [vmem:[%s1 + $0x20] sm:$0xff]
    %v19 = vld [vmem:[%s1 + $0x28] sm:$0xff]
    %v20 = vld [vmem:[%s1 + $0x30] sm:$0xff]
    %v21 = vld [vmem:[%s1 + $0x38] sm:$0xff]
    %v22 = vld [vmem:[%s1 + $0x40] sm:$0xff]
    %v23 = vld [vmem:[%s1 + $0x48] sm:$0xff]
    %v24 = vld [vmem:[%s1 + $0x50] sm:$0xff]
    %v25 = vld [vmem:[%s1 + $0x58] sm:$0xff]
    %v26 = vld [vmem:[%s1 + $0x60] sm:$0xff]
    %v27 = vld [vmem:[%s1 + $0x68] sm:$0xff]
    %v28 = vld [vmem:[%s1 + $0x70] sm:$0xff]
    %v29 = vld [vmem:[%s1 + $0x78] sm:$0xff]
    %v30 = vld [vmem:[%s1 + $0x80] sm:$0xff]
    %v31 = vld [vmem:[%s1 + $0x88] sm:$0xff]
    %v32 = vld [vmem:[%s1 + $0x90] sm:$0xff]
    %v33 = vld [vmem:[%s1 + $0x98] sm:$0xff]
    %v34 = vld [vmem:[%s1 + $0xa0] sm:$0xff]
    %v35 = vld [vmem:[%s1 + $0xa8] sm:$0xff]
    %v36 = vld [vmem:[%s1 + $0xb0] sm:$0xff]
    %v37 = vld [vmem:[%s1 + $0xb8] sm:$0xff]
    %v38 = vld [vmem:[%s1 + $0xc0] sm:$0xff]
    %v39 = vld [vmem:[%s1 + $0xc8] sm:$0xff]
    %v40 = vld [vmem:[%s1 + $0xd0] sm:$0xff]
    %v41 = vld [vmem:[%s1 + $0xd8] sm:$0xff]
    %v42 = vld [vmem:[%s1 + $0xe0] sm:$0xff]
    %v43 = vld [vmem:[%s1 + $0xe8] sm:$0xff]
    %v44 = vld [vmem:[%s1 + $0xf0] sm:$0xff]
    %v45 = vld [vmem:[%s1 + $0xf8] sm:$0xff]
    %vm46 = vcmask 261120
    %v48 = vsel %vm46, %v12, 0
    %v51 = vsel %vm46, %v13, 0
    %v54 = vsel %vm46, %v14, 0
    %v57 = vsel %vm46, %v15, 0
    %v60 = vsel %vm46, %v16, 0
    %v63 = vsel %vm46, %v17, 0
    %v66 = vsel %vm46, %v18, 0
    %v69 = vsel %vm46, %v19, 0
    %v72 = vsel %vm46, %v20, 0
    %v75 = vsel %vm46, %v21, 0
    %v78 = vsel %vm46, %v22, 0
    %v81 = vsel %vm46, %v23, 0
    %v84 = vsel %vm46, %v24, 0
    %v87 = vsel %vm46, %v25, 0
    %v90 = vsel %vm46, %v26, 0
    %v93 = vsel %vm46, %v27, 0
    %v96 = vsel %vm46, %v28, 0
    %v99 = vsel %vm46, %v29, 0
    %v102 = vsel %vm46, %v30, 0
    %v105 = vsel %vm46, %v31, 0
    %v108 = vsel %vm46, %v32, 0
    %v111 = vsel %vm46, %v33, 0
    %v114 = vsel %vm46, %v34, 0
    %v117 = vsel %vm46, %v35, 0
    %v120 = vsel %vm46, %v36, 0
    %v123 = vsel %vm46, %v37, 0
    %v126 = vsel %vm46, %v38, 0
    %v129 = vsel %vm46, %v39, 0
    %v132 = vsel %vm46, %v40, 0
    %v135 = vsel %vm46, %v41, 0
    %v138 = vsel %vm46, %v42, 0
    %v141 = vsel %vm46, %v43, 0
    %v144 = vsel %vm46, %v44, 0
    %v147 = vsel %vm46, %v45, 0
    %149 = vmatprep.subr.mxu0 0.0
    %150 = vmatpush1.xpose.msra.mxu0 %v54
    %151 = vmatprep.subr.mxu0 0.0
    %152 = vmatpush1.xpose.msra.mxu0 %v57
    %153 = vmatprep.subr.mxu0 0.0
    %154 = vmatpush1.xpose.msra.mxu0 %v60
    %155 = vmatprep.subr.mxu0 0.0
    %156 = vmatpush1.xpose.msra.mxu0 %v63
    %157 = vmatprep.subr.mxu0 0.0
    %158 = vmatpush1.xpose.msra.mxu0 %v66
    %159 = vmatprep.subr.mxu0 0.0
    %160 = vmatpush1.xpose.msra.mxu0 %v69
    %161 = vmatprep.subr.mxu0 0.0
    %162 = vmatpush1.xpose.msra.mxu0 %v72
    %163 = vmatprep.subr.mxu0 0.0
    %164 = vmatpush1.xpose.msra.mxu0 %v75
    %165 = vmatprep.subr.mxu0 0.0
    %166 = vmatpush1.xpose.msra.mxu0 %v78
    %167 = vmatprep.subr.mxu0 0.0
    %168 = vmatpush1.xpose.msra.mxu0 %v81
    %169 = vmatprep.subr.mxu0 0.0
    %170 = vmatpush1.xpose.msra.mxu0 %v84
    %171 = vmatprep.subr.mxu0 0.0
    %172 = vmatpush1.xpose.msra.mxu0 %v87
    %173 = vmatprep.subr.mxu0 0.0
    %174 = vmatpush1.xpose.msra.mxu0 %v90
    %175 = vmatprep.subr.mxu0 0.0
    %176 = vmatpush1.xpose.msra.mxu0 %v93
    %177 = vmatprep.subr.mxu0 0.0
    %178 = vmatpush1.xpose.msra.mxu0 %v96
    %179 = vmatprep.subr.mxu0 0.0
    %180 = vmatpush1.xpose.msra.mxu0 %v99
    %181 = vmatprep.subr.mxu0 0.0
    %182 = vmatpush1.xpose.msra.mxu0 %v102
    %183 = vmatprep.subr.mxu0 0.0
    %184 = vmatpush1.xpose.msra.mxu0 %v105
    %185 = vmatprep.subr.mxu0 0.0
    %186 = vmatpush1.xpose.msra.mxu0 %v108
    %187 = vmatprep.subr.mxu0 0.0
    %188 = vmatpush1.xpose.msra.mxu0 %v111
    %189 = vmatprep.subr.mxu0 0.0
    %190 = vmatpush1.xpose.msra.mxu0 %v114
    %191 = vmatprep.subr.mxu0 0.0
    %192 = vmatpush1.xpose.msra.mxu0 %v117
    %193 = vmatprep.subr.mxu0 0.0
    %194 = vmatpush1.xpose.msra.mxu0 %v120
    %195 = vmatprep.subr.mxu0 0.0
    %196 = vmatpush1.xpose.msra.mxu0 %v123
    %197 = vmatprep.subr.mxu0 0.0
    %198 = vmatpush1.xpose.msra.mxu0 %v126
    %199 = vmatprep.subr.mxu0 0.0
    %200 = vmatpush1.xpose.msra.mxu0 %v129
    %201 = vmatprep.subr.mxu0 0.0
    %202 = vmatpush1.xpose.msra.mxu0 %v132
    %203 = vmatprep.subr.mxu0 0.0
    %204 = vmatpush1.xpose.msra.mxu0 %v135
    %205 = vmatprep.subr.mxu0 0.0
    %206 = vmatpush1.xpose.msra.mxu0 %v138
    %207 = vmatprep.subr.mxu0 0.0
    %208 = vmatpush1.xpose.msra.mxu0 %v141
    %209 = vmatprep.subr.mxu0 0.0
    %210 = vmatpush1.xpose.msra.mxu0 %v144
    %211 = vmatprep.subr.mxu0 0.0
    %212 = vmatpush1.xpose.msra.mxu0 %v147
    %213 = vmatprep.mubr.f32.mxu0 0.0
    %214 = vmatmul.mubr.f32.gmra.mrb[0].mxu0 %v48
    %v215 = vpop.f32.mrb[0].mxu0
    %v216 = vadd.f32 0.0, %v215
    %v217 = vpop.f32.mrb[0].mxu0
    %v218 = vadd.f32 0.0, %v217
    %219 = vmatprep.mubr.f32.mxu0 0.0
    %220 = vmatmul.mubr.f32.gmra.mrb[0].mxu0 %v51
    %v221 = vpop.f32.mrb[0].mxu0
    %v222 = vadd.f32 0.0, %v221
    %v223 = vpop.f32.mrb[0].mxu0
    %v224 = vadd.f32 0.0, %v223
    %225 = vdwg.mxu0
    %226 = vst [vmem:[#allocation2] sm:$0xff] %v216
    %227 = vst [vmem:[#allocation2 + $0x8] sm:$0xff] %v218
    %228 = vst [vmem:[#allocation2 + $0x10] sm:$0xff] %v222
    %229 = vst [vmem:[#allocation2 + $0x18] sm:$0xff] %v224
    // Predicated region
    $region10: #{tpu_custom_call.1} parent=1 // pred_check
      _
    $region11: #{tpu_custom_call.1} parent=1 // pred_check_branch
      %231 = sbr.rel (0) target = $region13
    $region12: #{tpu_custom_call.1} parent=1 // pred_region
      %s233 = ssub.s32 512, 512
      %234 = vsyncadd [#allocation3], %s233
      %s235 = sshll.u32 [#allocation2], 4
      %s236 = int_to_ptr.vmem [resolvable:$true] %s235
      %241 = dma.vmem_to_hbm [thread:$0]  %s236, 512, %s2, [#allocation3], 256, 256, 16
    $region13: #{tpu_custom_call.1} parent=1 // pred_fallthru
      _
    // Predicated region
    $region14: #{tpu_custom_call.1} parent=1 // pred_check
      _
    $region15: #{tpu_custom_call.1} parent=1 // pred_check_branch
      %243 = sbr.rel (0) target = $region17
    $region16: #{tpu_custom_call.1} parent=1 // pred_region
      %244 = dma.done [#allocation3], 512
    $region17: #{tpu_custom_call.1} parent=1 // pred_fallthru
      _
    %245 = vsyncpa [#allocation3], 1

</llo_original>
